<compile_context>
chip_gen: v7x
topology: tpu7x:2x2x1
jax: 0.10.0
libtpu: 0.0.40
codegen_flags: <defaults>
</compile_context>

<pallas_src>
import jax
import jax.numpy as jnp
from jax.experimental import pallas as pl
from jax.experimental.pallas import tpu as pltpu


def _round_up(x, m):
    return (x + m - 1) // m * m


# ---------------------------------------------------------------------------
# Pallas kernel
# ---------------------------------------------------------------------------
def _siglip_embed_kernel(patches_ref, w_ref, pos_ref, out_ref):
    """One (patch-tile, batch) grid point.

    patches_ref: (1, tN, Kp)  patchified pixels for this tile (zero-padded K)
    w_ref:       (Kp, D)      conv weight, reshaped/transposed/padded
    pos_ref:     (tN, D)      position-embedding rows (conv bias folded in, f32)
    out_ref:     (1, tN, D)
    """
    acc = jnp.dot(
        patches_ref[0], w_ref[...], preferred_element_type=jnp.float32
    )
    out_ref[0] = (acc + pos_ref[...]).astype(out_ref.dtype)


# ---------------------------------------------------------------------------
# Wrapper
# ---------------------------------------------------------------------------
def siglip_vision_embeddings(
    pixel_values,
    conv_w,
    conv_b,
    pos_emb,
    *,
    patch_size,
    tile_n=None,
    operand_dtype=jnp.bfloat16,
    out_dtype=None,
):
    """pixel_values: (B, C, H, W).  conv_w: (D, C, P, P).  conv_b: (D,).
    pos_emb: (num_patches, D).  Returns (B, num_patches, D)."""
    B, C, H, W = pixel_values.shape
    P = patch_size
    Hp, Wp = H // P, W // P
    N = Hp * Wp
    D = conv_w.shape[0]
    K = C * P * P
    if out_dtype is None:
        out_dtype = pixel_values.dtype

    # Real tile on the patch axis: sublane-aligned (16 covers bf16/f32 packing),
    # capped at 256 (multiple of 256 fills v6e/v7x 256x256 MXU tiles).
    if tile_n is None:
        tile_n = min(256, _round_up(N, 16))
    assert tile_n % 16 == 0, "tile_n must be sublane-aligned"

    N_pad = _round_up(N, tile_n)          # e.g. 729 -> 768 unlocks 256-row tiles
    K_pad = _round_up(K, 128)             # lane-aligned contraction depth

    # --- patchify (layout only; operand-dtype cast fused into the same expr) --
    # (B, C, H, W) -> (B, N, C*P*P), inner order (c, ph, pw) matches Conv2d.
    px = pixel_values.astype(operand_dtype)
    patches = px.reshape(B, C, Hp, P, Wp, P)
    patches = patches.transpose(0, 2, 4, 1, 3, 5).reshape(B, N, K)
    patches = jnp.pad(patches, ((0, 0), (0, N_pad - N), (0, K_pad - K)))

    # Conv2d weight (D, C, P, P) -> (K, D), padded along K (zeros contribute 0).
    w2d = conv_w.reshape(D, K).T.astype(operand_dtype)
    w2d = jnp.pad(w2d, ((0, K_pad - K), (0, 0)))

    # Fold conv bias into the position table (exact); keep f32 so it adds onto
    # the f32 accumulator before the final cast.
    pos = pos_emb.astype(jnp.float32) + conv_b.astype(jnp.float32)[None, :]
    pos = jnp.pad(pos, ((0, N_pad - N), (0, 0)))

    # Grid: n outer, b inner -> pos block index constant across the inner batch
    # loop (fetched once per patch-tile, not once per image).
    grid = (N_pad // tile_n, B)

    out = pl.pallas_call(
        _siglip_embed_kernel,
        out_shape=jax.ShapeDtypeStruct((B, N_pad, D), out_dtype),
        grid_spec=pltpu.PrefetchScalarGridSpec(
            num_scalar_prefetch=0,
            grid=grid,
            in_specs=[
                pl.BlockSpec((1, tile_n, K_pad), lambda n, b: (b, n, 0)),
                pl.BlockSpec((K_pad, D), lambda n, b: (0, 0)),    # weight: resident
                pl.BlockSpec((tile_n, D), lambda n, b: (n, 0)),   # pos: const over b
            ],
            out_specs=pl.BlockSpec((1, tile_n, D), lambda n, b: (b, n, 0)),
        ),
        compiler_params=pltpu.CompilerParams(
            dimension_semantics=("parallel", "parallel"),
        ),
        # TODO(synk): consider allow_input_fusion to fold the wrapper patchify
        # transpose into the pallas input and avoid the HBM round-trip.
    )(patches, w2d, pos)
    return out[:, :N, :]


# ---------------------------------------------------------------------------
# Pure-JAX reference (mirrors nn.Conv2d + flatten/transpose + pos-emb add)
# ---------------------------------------------------------------------------
def siglip_vision_embeddings_ref(pixel_values, conv_w, conv_b, pos_emb, *, patch_size):
    P = patch_size
    conv_out = jax.lax.conv_general_dilated(
        pixel_values,
        conv_w,
        window_strides=(P, P),
        padding="VALID",
        dimension_numbers=("NCHW", "OIHW", "NCHW"),
    )
    conv_out = conv_out + conv_b[None, :, None, None]
    B, D, Hp, Wp = conv_out.shape
    emb = conv_out.reshape(B, D, Hp * Wp).transpose(0, 2, 1)  # flatten(2).transpose(1,2)
    return emb + pos_emb[None]


# ---------------------------------------------------------------------------
# Main
# ---------------------------------------------------------------------------
if __name__ == "__main__":
    # small config consistent with SiglipVisionConfig
    batch_size = 2
    num_channels = 3
    image_size = 16
    patch_size = 4
    hidden_size = 32
    num_patches = (image_size // patch_size) ** 2   # 16

    key = jax.random.PRNGKey(0)
    k_px, k_w, k_b, k_pos = jax.random.split(key, 4)

    pixel_values = jax.random.normal(
        k_px, (batch_size, num_channels, image_size, image_size), jnp.float32
    )
    fan_in = num_channels * patch_size * patch_size
    conv_w = (
        jax.random.normal(
            k_w, (hidden_size, num_channels, patch_size, patch_size), jnp.float32
        )
        * fan_in ** -0.5
    )
    conv_b = jax.random.normal(k_b, (hidden_size,), jnp.float32) * 0.01
    pos_emb = (
        jax.random.normal(k_pos, (num_patches, hidden_size), jnp.float32) * 0.02
    )

    ref = siglip_vision_embeddings_ref(
        pixel_values, conv_w, conv_b, pos_emb, patch_size=patch_size
    )

    # 1) exact-semantics check: f32 operands, tight tolerance.
    out_f32 = siglip_vision_embeddings(
        pixel_values, conv_w, conv_b, pos_emb,
        patch_size=patch_size, operand_dtype=jnp.float32,
    )
    out_f32 = jax.block_until_ready(out_f32)
    assert out_f32.shape == (batch_size, num_patches, hidden_size)
    assert jnp.allclose(out_f32, ref, atol=1e-4, rtol=1e-4), (
        float(jnp.max(jnp.abs(out_f32 - ref)))
    )

    # 2) production path: bf16 operands, f32 accumulation (looser tolerance).
    out_bf16 = siglip_vision_embeddings(
        pixel_values, conv_w, conv_b, pos_emb,
        patch_size=patch_size, operand_dtype=jnp.bfloat16,
    )
    out_bf16 = jax.block_until_ready(out_bf16)
    assert out_bf16.shape == (batch_size, num_patches, hidden_size)
    assert jnp.allclose(out_bf16, ref, atol=5e-2, rtol=5e-2), (
        float(jnp.max(jnp.abs(out_bf16 - ref)))
    )

    print("KERNEL_OK")
</pallas_src>

<mosaic_0001>
module attributes {stable_mosaic.version = 11 : i64} {
  func.func @_siglip_embed_kernel(%arg0: i32, %arg1: i32, %arg2: memref<1x16x128xf32, #tpu.memory_space<vmem>>, %arg3: memref<128x32xf32, #tpu.memory_space<vmem>>, %arg4: memref<16x32xf32, #tpu.memory_space<vmem>>, %arg5: memref<1x16x32xf32, #tpu.memory_space<vmem>>) attributes {dimension_semantics = [#tpu.dimension_semantics<parallel>, #tpu.dimension_semantics<parallel>], iteration_bounds = array<i64: 1, 2>, scalar_prefetch = 0 : i64, scratch_operands = 0 : i64, tpu.core_type = #tpu.core_type<tc>, window_params = [{transform_indices = @transform_0, window_bounds = array<i64: 1, 16, 128>}, {pipeline_mode = #tpu.pipeline_mode<synchronous>, transform_indices = @transform_1, window_bounds = array<i64: 128, 32>}, {transform_indices = @transform_2, window_bounds = array<i64: 16, 32>}, {transform_indices = @transform_3, window_bounds = array<i64: 1, 16, 32>}]} {
    %c0 = arith.constant 0 : index
    %c0_0 = arith.constant 0 : index
    %c0_1 = arith.constant 0 : index
    %0 = vector.load %arg2[%c0, %c0_0, %c0_1] : memref<1x16x128xf32, #tpu.memory_space<vmem>>, vector<1x16x128xf32>
    %1 = vector.shape_cast %0 : vector<1x16x128xf32> to vector<16x128xf32>
    %c0_2 = arith.constant 0 : index
    %c0_3 = arith.constant 0 : index
    %2 = vector.load %arg3[%c0_2, %c0_3] : memref<128x32xf32, #tpu.memory_space<vmem>>, vector<128x32xf32>
    %cst = arith.constant dense<0.000000e+00> : vector<16x32xf32>
    %3 = tpu.matmul %1, %2, %cst {dimension_numbers = #tpu.dot_dimension_numbers<[1], [0], [0], [1], [0, 0, 1, 1], [], []>} : vector<16x128xf32>, vector<128x32xf32>, vector<16x32xf32> -> vector<16x32xf32>
    %c0_4 = arith.constant 0 : index
    %c0_5 = arith.constant 0 : index
    %4 = vector.load %arg4[%c0_4, %c0_5] : memref<16x32xf32, #tpu.memory_space<vmem>>, vector<16x32xf32>
    %5 = arith.addf %3, %4 : vector<16x32xf32>
    %c0_6 = arith.constant 0 : index
    %c0_7 = arith.constant 0 : index
    %c0_8 = arith.constant 0 : index
    %6 = vector.load %arg5[%c0_6, %c0_7, %c0_8] : memref<1x16x32xf32, #tpu.memory_space<vmem>>, vector<1x16x32xf32>
    %7 = vector.shape_cast %6 : vector<1x16x32xf32> to vector<16x32xf32>
    %8 = vector.shape_cast %5 : vector<16x32xf32> to vector<1x16x32xf32>
    tpu.vector_store %arg5[%c0_6, %c0_7, %c0_8], %8 {strides = array<i32>} : memref<1x16x32xf32, #tpu.memory_space<vmem>>, vector<1x16x32xf32>,
    return
  }
  func.func @transform_0(%arg0: i32, %arg1: i32) -> (i32, i32, i32) {
    %c0_i32 = arith.constant 0 : i32
    %c0_i32_0 = arith.constant 0 : i32
    return %arg1, %arg0, %c0_i32 : i32, i32, i32
  }
  func.func @transform_1(%arg0: i32, %arg1: i32) -> (i32, i32) {
    %c0_i32 = arith.constant 0 : i32
    %c0_i32_0 = arith.constant 0 : i32
    %c0_i32_1 = arith.constant 0 : i32
    return %c0_i32, %c0_i32_0 : i32, i32
  }
  func.func @transform_2(%arg0: i32, %arg1: i32) -> (i32, i32) {
    %c0_i32 = arith.constant 0 : i32
    %c0_i32_0 = arith.constant 0 : i32
    return %arg0, %c0_i32 : i32, i32
  }
  func.func @transform_3(%arg0: i32, %arg1: i32) -> (i32, i32, i32) {
    %c0_i32 = arith.constant 0 : i32
    %c0_i32_0 = arith.constant 0 : i32
    return %arg1, %arg0, %c0_i32 : i32, i32, i32
  }
}

</mosaic_0001>

<llo_original>
// kernel: tpu_custom_call.1
$region0: #{tpu_custom_call.1}
  #allocation0 [shape = 'u32[]', space=smem, size = 0x4, offset = 0x4, fixed_abs, tag = 'smem constant byte address 0x4 - core index']
  #allocation1 [shape = 'u32[144,128]{1,0:T(1,128)}', space=vmem, size = 0x12000, scoped, tag = 'internal scratch']
  %s0 = inlined_call_operand.vmem [shape: f32[2,16,128], index: 0, kind: input, shape index: {}]
  %s1 = inlined_call_operand.vmem [shape: f32[128,32], index: 1, kind: input, shape index: {}]
  %s2 = inlined_call_operand.vmem [shape: f32[16,32], index: 2, kind: input, shape index: {}]
  %s3 = inlined_call_operand.hbm [shape: f32[2,16,32], index: 3, kind: output, shape index: {}]
  %s4 = sld [smem:[#allocation0]]
  $region45: #{tpu_custom_call.1} parent=0
    _
  %s6 = ssub.s32 1, %s4
  %s7 = scalar_select 0, %s6, %s4
  $region1: #{tpu_custom_call.1} parent=0
    #allocation2 [shape = 'u8[16384]{0}', space=vmem, size = 0x4000, scoped, tag = 'output window, operand 0']
    #allocation3 [shape = 's32[2]{0}', space=sflag, size = 0x8, scoped, tag = 'scoped memory for tpu_custom_call.1']
    %8 = vsyncpa [#allocation3], 0
    %s9 = scalar_lea.sflag [#allocation3], 1
    %10 = vsyncpa %s9, 0
    loop: start=0, step=1, limit=4
    $region2: #{tpu_custom_call.1} parent=1 // loop_pre_header
      _
    $region3: #{tpu_custom_call.1} parent=1 // loop_header
      %s12 = sphi 0, %s16
      %p13 = scmp.ge.s32.totalorder %s12, 4
      %s19 = sphi 0, %s31
      %s20 = sphi 0, %s27
      %s21 = sphi 0, %s19
      %s22 = sphi 0, %s20
      %s23 = sphi 0, %s21
      %s24 = sphi 0, %s22
      %s36 = sphi 0, %s38
      %s39 = sphi 0, %s36
      %s40 = sphi 0, %s39
      %s56 = sphi 0, %s40
      %s60 = sphi 0, %s60
      %s62 = sphi 0, %s60
      %s63 = sphi 0, %s62
      %s77 = sphi 0, %s63
      %s83 = sphi 0, %s85
      %s86 = sphi 0, %s83
      %s87 = sphi 0, %s86
      %s103 = sphi 0, %s87
      %s111 = sphi 0, %s113
      %s114 = sphi 0, %s111
      %s115 = sphi 0, %s114
      %s131 = sphi 0, %s115
    $region4: #{tpu_custom_call.1} parent=1 // loop_header_branch
      %15 = sbr.rel (%p13) target = $region8
    $region5: #{tpu_custom_call.1} parent=1 // loop_body
      %s17 = ssub.s32 %s12, 1
      %s18 = ssub.s32 %s12, 2
      %s25 = sadd.s32 1, %s20
      %p26 = scmp.ge.s32.totalorder %s25, 2
      %s27 = scalar_select %p26, 0, %s25
      %s28 = sadd.s32 1, %s19
      %s29 = scalar_select %p26, %s28, %s19
      %p30 = scmp.ge.s32.totalorder %s29, 1
      %s31 = scalar_select %p30, 0, %s29
      %s32 = ssub.s32 %s20, %s27
      %s33 = ssub.s32 %s19, %s31
      %s34 = sor.u32 %s32, %s33
      %p35 = scmp.eq.s32.totalorder %s34, 0
      %s37 = sadd.s32 %s36, 1
      %s38 = scalar_select %p35, %s36, %s37
      %p41 = pneg %p35
      %p42 = scmp.eq.s32.totalorder %s12, 1
      %p43 = por %p41, %p42
      %p44 = scmp.ne.s32.totalorder %s36, %s39
      %p45 = scmp.eq.s32.totalorder %s12, 0
      %p46 = por %p44, %p45
      %p47 = scmp.ne.s32.totalorder %s36, %s39
      %p48 = scmp.eq.s32.totalorder %s17, 1
      %p49 = por %p47, %p48
      %p50 = scmp.ne.s32.totalorder %s39, %s40
      %p51 = scmp.eq.s32.totalorder %s17, 0
      %p52 = por %p50, %p51
      %p53 = scmp.ne.s32.totalorder %s39, %s40
      %p54 = scmp.eq.s32.totalorder %s18, 1
      %p55 = por %p53, %p54
      %p57 = scmp.ne.s32.totalorder %s40, %s56
      %p58 = scmp.eq.s32.totalorder %s18, 0
      %p59 = por %p57, %p58
      %s61 = sadd.s32 %s60, 1
      %p64 = scmp.eq.s32.totalorder %s12, 1
      %p65 = scmp.ne.s32.totalorder %s60, %s62
      %p66 = scmp.eq.s32.totalorder %s12, 0
      %p67 = por %p65, %p66
      %p68 = scmp.ne.s32.totalorder %s60, %s62
      %p69 = scmp.eq.s32.totalorder %s17, 1
      %p70 = por %p68, %p69
      %p71 = scmp.ne.s32.totalorder %s62, %s63
      %p72 = scmp.eq.s32.totalorder %s17, 0
      %p73 = por %p71, %p72
      %p74 = scmp.ne.s32.totalorder %s62, %s63
      %p75 = scmp.eq.s32.totalorder %s18, 1
      %p76 = por %p74, %p75
      %p78 = scmp.ne.s32.totalorder %s63, %s77
      %p79 = scmp.eq.s32.totalorder %s18, 0
      %p80 = por %p78, %p79
      %s81 = ssub.s32 %s19, %s31
      %p82 = scmp.eq.s32.totalorder %s81, 0
      %s84 = sadd.s32 %s83, 1
      %s85 = scalar_select %p82, %s83, %s84
      %p88 = pneg %p82
      %p89 = scmp.eq.s32.totalorder %s12, 1
      %p90 = por %p88, %p89
      %p91 = scmp.ne.s32.totalorder %s83, %s86
      %p92 = scmp.eq.s32.totalorder %s12, 0
      %p93 = por %p91, %p92
      %p94 = scmp.ne.s32.totalorder %s83, %s86
      %p95 = scmp.eq.s32.totalorder %s17, 1
      %p96 = por %p94, %p95
      %p97 = scmp.ne.s32.totalorder %s86, %s87
      %p98 = scmp.eq.s32.totalorder %s17, 0
      %p99 = por %p97, %p98
      %p100 = scmp.ne.s32.totalorder %s86, %s87
      %p101 = scmp.eq.s32.totalorder %s18, 1
      %p102 = por %p100, %p101
      %p104 = scmp.ne.s32.totalorder %s87, %s103
      %p105 = scmp.eq.s32.totalorder %s18, 0
      %p106 = por %p104, %p105
      %s107 = ssub.s32 %s20, %s27
      %s108 = ssub.s32 %s19, %s31
      %s109 = sor.u32 %s107, %s108
      %p110 = scmp.eq.s32.totalorder %s109, 0
      %s112 = sadd.s32 %s111, 1
      %s113 = scalar_select %p110, %s111, %s112
      %p116 = pneg %p110
      %p117 = scmp.eq.s32.totalorder %s12, 1
      %p118 = por %p116, %p117
      %p119 = scmp.ne.s32.totalorder %s111, %s114
      %p120 = scmp.eq.s32.totalorder %s12, 0
      %p121 = por %p119, %p120
      %p122 = scmp.ne.s32.totalorder %s111, %s114
      %p123 = scmp.eq.s32.totalorder %s17, 1
      %p124 = por %p122, %p123
      %p125 = scmp.ne.s32.totalorder %s114, %s115
      %p126 = scmp.eq.s32.totalorder %s17, 0
      %p127 = por %p125, %p126
      %p128 = scmp.ne.s32.totalorder %s114, %s115
      %p129 = scmp.eq.s32.totalorder %s18, 1
      %p130 = por %p128, %p129
      %p132 = scmp.ne.s32.totalorder %s115, %s131
      %p133 = scmp.eq.s32.totalorder %s18, 0
      %p134 = por %p132, %p133
      %p135 = scmp.le.s32.totalorder 1, %s12
      %p136 = scmp.lt.s32.totalorder %s12, 3
      %p137 = pnand %p135, %p136
      %p138 = pneg %p137
      // Predicated region
      $region9: #{tpu_custom_call.1} parent=5 // pred_check
        _
      $region10: #{tpu_custom_call.1} parent=5 // pred_check_branch
        %140 = sbr.rel (%p137) target = $region12
      $region11: #{tpu_custom_call.1} parent=5 // pred_region
        %s141 = ssub.s32 %s12, 1
        // Predicated region
        $region13: #{tpu_custom_call.1} parent=11 // pred_check
          %p142 = pneg %p73
        $region14: #{tpu_custom_call.1} parent=11 // pred_check_branch
          %144 = sbr.rel (%p142) target = $region16
        $region15: #{tpu_custom_call.1} parent=11 // pred_region
          _
        $region16: #{tpu_custom_call.1} parent=11 // pred_fallthru
          _
        // Predicated region
        $region17: #{tpu_custom_call.1} parent=11 // pred_check
          %p145 = pneg %p99
        $region18: #{tpu_custom_call.1} parent=11 // pred_check_branch
          %147 = sbr.rel (%p145) target = $region20
        $region19: #{tpu_custom_call.1} parent=11 // pred_region
          %s148 = smul.u32 2, %s21
          %p149 = scmp.lt.s32.totalorder %s148, 1
          %s150 = scalar_select %p149, %s148, 1
          %s151 = smul.addr %s150, 8
          %s152 = scalar_lea.vmem %s2, %s151
          %s153 = smul.u32 2, %s21
        $region20: #{tpu_custom_call.1} parent=11 // pred_fallthru
          _
      $region12: #{tpu_custom_call.1} parent=5 // pred_fallthru
        _
      %p154 = scmp.lt.s32.totalorder %s12, 2
      // Predicated region
      $region21: #{tpu_custom_call.1} parent=5 // pred_check
        %p155 = pneg %p154
      $region22: #{tpu_custom_call.1} parent=5 // pred_check_branch
        %157 = sbr.rel (%p155) target = $region24
      $region23: #{tpu_custom_call.1} parent=5 // pred_region
        // Predicated region
        $region25: #{tpu_custom_call.1} parent=23 // pred_check
          %p158 = pneg %p46
        $region26: #{tpu_custom_call.1} parent=23 // pred_check_branch
          %160 = sbr.rel (%p158) target = $region28
        $region27: #{tpu_custom_call.1} parent=23 // pred_region
          %s161 = smul.u32 2, %s19
          %p162 = scmp.lt.s32.totalorder %s20, 1
          %s163 = scalar_select %p162, %s20, 1
          %p164 = scmp.lt.s32.totalorder %s161, 1
          %s165 = scalar_select %p164, %s161, 1
          %s166 = smul.addr %s163, 2
          %s167 = sadd.s32 %s165, %s166
          %s168 = smul.addr %s167, 8
          %s169 = scalar_lea.vmem %s0, %s168
          %s170 = smul.u32 2, %s19
        $region28: #{tpu_custom_call.1} parent=23 // pred_fallthru
          _
      $region24: #{tpu_custom_call.1} parent=5 // pred_fallthru
        _
      %p171 = scmp.le.s32.totalorder 1, %s12
      %p172 = scmp.lt.s32.totalorder %s12, 3
      %p173 = pnand %p171, %p172
      %p174 = pneg %p173
      // Predicated region
      $region29: #{tpu_custom_call.1} parent=5 // pred_check
        _
      $region30: #{tpu_custom_call.1} parent=5 // pred_check_branch
        %176 = sbr.rel (%p173) target = $region32
      $region31: #{tpu_custom_call.1} parent=5 // pred_region
        %s177 = ssub.s32 %s12, 1
        %s178 = smul.u32 2, %s21
        %p179 = scmp.lt.s32.totalorder %s22, 1
        %s180 = scalar_select %p179, %s22, 1
        %p181 = scmp.lt.s32.totalorder %s178, 1
        %s182 = scalar_select %p181, %s178, 1
        %s183 = smul.addr %s180, 2
        %s184 = sadd.s32 %s182, %s183
        %s185 = smul.addr %s184, 8
        %s186 = scalar_lea.vmem %s0, %s185
        %p187 = pneg %p52
        %p188 = pneg %p49
        %p189 = pneg %p73
        %p190 = pneg %p70
        %s191 = smul.u32 2, %s21
        %p192 = scmp.lt.s32.totalorder %s191, 1
        %s193 = scalar_select %p192, %s191, 1
        %s194 = smul.addr %s193, 8
        %s195 = scalar_lea.vmem %s2, %s194
        %p196 = pneg %p99
        %p197 = pneg %p96
        %p198 = pneg %p127
        %p199 = pneg %p124
        %s200 = sand.u32 %s114, 1
        %s201 = scalar_lea.sflag [#allocation3], %s200
        %s202 = sand.u32 %s114, 1
        %s203 = smul.addr %s202, 16
        %s204 = scalar_lea.vmem [#allocation2], %s203
        %s205 = smul.u32 2, %s21
        %p206 = scmp.lt.s32.totalorder %s22, 1
        %s207 = scalar_select %p206, %s22, 1
        %p208 = scmp.lt.s32.totalorder %s205, 1
        %s209 = scalar_select %p208, %s205, 1
        %s210 = smul.addr %s207, 2
        %s211 = sadd.s32 %s209, %s210
        %s212 = smul.addr %s211, 8
        %s213 = scalar_lea.vmem %s0, %s212
        %s214 = smul.u32 2, %s21
        %s215 = smul.u32 2, %s21
        %p216 = scmp.lt.s32.totalorder %s215, 1
        %s217 = scalar_select %p216, %s215, 1
        %s218 = smul.addr %s217, 8
        %s219 = scalar_lea.vmem %s2, %s218
        %s220 = smul.u32 2, %s21
        %s221 = smul.u32 2, %s21
        %v222 = vld [vmem:[%s213] sm:$0xff]
        %v223 = vld [vmem:[%s213 + $0x8] sm:$0xff]
        %v224 = vld [vmem:[%s1] sm:$0xff]
        %v225 = vld [vmem:[%s1 + $0x8] sm:$0xff]
        %v226 = vld [vmem:[%s1 + $0x10] sm:$0xff]
        %v227 = vld [vmem:[%s1 + $0x18] sm:$0xff]
        %v228 = vld [vmem:[%s1 + $0x20] sm:$0xff]
        %v229 = vld [vmem:[%s1 + $0x28] sm:$0xff]
        %v230 = vld [vmem:[%s1 + $0x30] sm:$0xff]
        %v231 = vld [vmem:[%s1 + $0x38] sm:$0xff]
        %v232 = vld [vmem:[%s1 + $0x40] sm:$0xff]
        %v233 = vld [vmem:[%s1 + $0x48] sm:$0xff]
        %v234 = vld [vmem:[%s1 + $0x50] sm:$0xff]
        %v235 = vld [vmem:[%s1 + $0x58] sm:$0xff]
        %v236 = vld [vmem:[%s1 + $0x60] sm:$0xff]
        %v237 = vld [vmem:[%s1 + $0x68] sm:$0xff]
        %v238 = vld [vmem:[%s1 + $0x70] sm:$0xff]
        %v239 = vld [vmem:[%s1 + $0x78] sm:$0xff]
        %v240 = vld [vmem:[%s219] sm:$0xff]
        %v241 = vld [vmem:[%s219 + $0x8] sm:$0xff]
        %242 = vmatprep.subr.mxu0 0.0
        %243 = vmatpush1.msra.mxu0 %v224
        %244 = vmatprep.subr.mxu0 0.0
        %245 = vmatpush1.msra.mxu0 %v225
        %246 = vmatprep.subr.mxu0 0.0
        %247 = vmatpush1.msra.mxu0 %v226
        %248 = vmatprep.subr.mxu0 0.0
        %249 = vmatpush1.msra.mxu0 %v227
        %250 = vmatprep.subr.mxu0 0.0
        %251 = vmatpush1.msra.mxu0 %v228
        %252 = vmatprep.subr.mxu0 0.0
        %253 = vmatpush1.msra.mxu0 %v229
        %254 = vmatprep.subr.mxu0 0.0
        %255 = vmatpush1.msra.mxu0 %v230
        %256 = vmatprep.subr.mxu0 0.0
        %257 = vmatpush1.msra.mxu0 %v231
        %258 = vmatprep.subr.mxu0 0.0
        %259 = vmatpush1.msra.mxu0 %v232
        %260 = vmatprep.subr.mxu0 0.0
        %261 = vmatpush1.msra.mxu0 %v233
        %262 = vmatprep.subr.mxu0 0.0
        %263 = vmatpush1.msra.mxu0 %v234
        %264 = vmatprep.subr.mxu0 0.0
        %265 = vmatpush1.msra.mxu0 %v235
        %266 = vmatprep.subr.mxu0 0.0
        %267 = vmatpush1.msra.mxu0 %v236
        %268 = vmatprep.subr.mxu0 0.0
        %269 = vmatpush1.msra.mxu0 %v237
        %270 = vmatprep.subr.mxu0 0.0
        %271 = vmatpush1.msra.mxu0 %v238
        %272 = vmatprep.subr.mxu0 0.0
        %273 = vmatpush1.msra.mxu0 %v239
        %274 = vmatprep.subr.mxu0 0.0
        %275 = vmatpush1.msra.mxu0 0.0
        %276 = vmatprep.subr.mxu0 0.0
        %277 = vmatpush1.msra.mxu0 0.0
        %278 = vmatprep.subr.mxu0 0.0
        %279 = vmatpush1.msra.mxu0 0.0
        %280 = vmatprep.subr.mxu0 0.0
        %281 = vmatpush1.msra.mxu0 0.0
        %282 = vmatprep.subr.mxu0 0.0
        %283 = vmatpush1.msra.mxu0 0.0
        %284 = vmatprep.subr.mxu0 0.0
        %285 = vmatpush1.msra.mxu0 0.0
        %286 = vmatprep.subr.mxu0 0.0
        %287 = vmatpush1.msra.mxu0 0.0
        %288 = vmatprep.subr.mxu0 0.0
        %289 = vmatpush1.msra.mxu0 0.0
        %290 = vmatprep.subr.mxu0 0.0
        %291 = vmatpush1.msra.mxu0 0.0
        %292 = vmatprep.subr.mxu0 0.0
        %293 = vmatpush1.msra.mxu0 0.0
        %294 = vmatprep.subr.mxu0 0.0
        %295 = vmatpush1.msra.mxu0 0.0
        %296 = vmatprep.subr.mxu0 0.0
        %297 = vmatpush1.msra.mxu0 0.0
        %298 = vmatprep.subr.mxu0 0.0
        %299 = vmatpush1.msra.mxu0 0.0
        %300 = vmatprep.subr.mxu0 0.0
        %301 = vmatpush1.msra.mxu0 0.0
        %302 = vmatprep.subr.mxu0 0.0
        %303 = vmatpush1.msra.mxu0 0.0
        %304 = vmatprep.subr.mxu0 0.0
        %305 = vmatpush1.msra.mxu0 0.0
        %306 = vmatprep.mubr.f32.mxu0 0.0
        %307 = vmatmul.mubr.f32.gmra.mrb[0].mxu0 %v222
        %v308 = vpop.f32.mrb[0].mxu0
        %v309 = vadd.f32 %v240, %v308
        %v310 = vpop.f32.mrb[0].mxu0
        %311 = vmatprep.mubr.f32.mxu0 0.0
        %312 = vmatmul.mubr.f32.gmra.mrb[0].mxu0 %v223
        %v313 = vpop.f32.mrb[0].mxu0
        %v314 = vadd.f32 %v241, %v313
        %v315 = vpop.f32.mrb[0].mxu0
        %316 = vdwg.mxu0
        %vm317 = vcmask 261120
        %318 = vst.msk [vmem:[%s204] sm:$0xff] %vm317, %v309
        %319 = vst.msk [vmem:[%s204 + $0x8] sm:$0xff] %vm317, %v314
        %s320 = sand.u32 %s114, 1
        %s321 = scalar_lea.sflag [#allocation3], %s320
        %s322 = sand.u32 %s114, 1
        %s323 = smul.addr %s322, 16
        %s324 = scalar_lea.vmem [#allocation2], %s323
        // Predicated region
        $region33: #{tpu_custom_call.1} parent=31 // pred_check
          %p325 = pneg %p124
        $region34: #{tpu_custom_call.1} parent=31 // pred_check_branch
          %327 = sbr.rel (%p325) target = $region36
        $region35: #{tpu_custom_call.1} parent=31 // pred_region
          %s328 = smul.u32 2, %s21
          %s330 = ssub.s32 256, 256
          %331 = vsyncadd %s321, %s330
          %s332 = smul.addr %s22, 2
          %s333 = sadd.s32 %s328, %s332
          %s334 = smul.addr %s333, 128
          %s335 = scalar_lea.hbm %s3, %s334
          %s336 = sshll.u32 %s324, 4
          %s337 = int_to_ptr.vmem [resolvable:$true] %s336
          %342 = dma.vmem_to_hbm [thread:$0]  %s337, 256, %s335, %s321, 128, 128, 8
        $region36: #{tpu_custom_call.1} parent=31 // pred_fallthru
          _
      $region32: #{tpu_custom_call.1} parent=5 // pred_fallthru
        _
      %p343 = scmp.le.s32.totalorder 2, %s12
      // Predicated region
      $region37: #{tpu_custom_call.1} parent=5 // pred_check
        %p344 = pneg %p343
      $region38: #{tpu_custom_call.1} parent=5 // pred_check_branch
        %346 = sbr.rel (%p344) target = $region40
      $region39: #{tpu_custom_call.1} parent=5 // pred_region
        %s347 = ssub.s32 %s12, 2
        // Predicated region
        $region41: #{tpu_custom_call.1} parent=39 // pred_check
          %p348 = pneg %p130
        $region42: #{tpu_custom_call.1} parent=39 // pred_check_branch
          %350 = sbr.rel (%p348) target = $region44
        $region43: #{tpu_custom_call.1} parent=39 // pred_region
          %s351 = sand.u32 %s115, 1
          %s352 = scalar_lea.sflag [#allocation3], %s351
          %s353 = sand.u32 %s115, 1
          %s354 = smul.addr %s353, 16
          %s355 = scalar_lea.vmem [#allocation2], %s354
          %356 = dma.done %s352, 256
        $region44: #{tpu_custom_call.1} parent=39 // pred_fallthru
          _
      $region40: #{tpu_custom_call.1} parent=5 // pred_fallthru
        _
    $region6: #{tpu_custom_call.1} parent=1 // loop_footer
      %s16 = sadd.s32 1, %s12
    $region7: #{tpu_custom_call.1} parent=1 // loop_footer_branch
      %11 = sbr.rel target = $region3
    $region8: #{tpu_custom_call.1} parent=1 // loop_exit
      _
    %357 = vsyncpa [#allocation3], 1
    %s358 = scalar_lea.sflag [#allocation3], 1
    %359 = vsyncpa %s358, 1

</llo_original>
